<compile_context>
chip_gen: v6e
topology: v6e:2x2x1
jax: 0.10.0
libtpu: 0.0.40
codegen_flags: <defaults>
</compile_context>

<pallas_src>
import functools

import jax
import jax.numpy as jnp
from jax.experimental import pallas as pl
from jax.experimental.pallas import tpu as pltpu

_SUBLANE = 8    # f32 sublane group
_LANE = 128     # lane width


def rnn_classifier_kernel(
    x2d_ref,       # (T*Bp, I)  bf16  all time steps, seq-major, batch padded to Bp
    wih_t_ref,     # (I, H)     bf16  W_ih^T
    whh_t_ref,     # (H, H)     bf16  W_hh^T
    b_ref,         # (1, H)     f32   b_ih + b_hh (pre-merged)
    wfc_t_ref,     # (H, Cp)    bf16  W_fc^T, lane-padded to Cp
    bfc_ref,       # (1, Cp)    f32   b_fc, lane-padded
    out_ref,       # (Bp, Cp)   f32   padded logits
    *,
    seq_len,       # static T
    batch_padded,  # static Bp (multiple of 8)
):
    # Hoisted input projection: ONE bf16 MXU matmul covering every time step,
    # f32 accumulation, merged bias added once.
    xp = (
        jnp.dot(x2d_ref[...], wih_t_ref[...], preferred_element_type=jnp.float32)
        + b_ref[...]
    )                                            # (T*Bp, H) f32

    # h0 == 0 -> the recurrent matmul of step 0 is identically zero; skip it.
    h = jnp.maximum(xp[0:batch_padded, :], 0.0)  # (Bp, H) f32, sublane-aligned slice

    # Small static T: fully unrolled recurrence (scheduler-visible).  W_hh^T is
    # re-read from its VMEM ref each step to keep vreg pressure low.
    # TODO(synk): for long T, switch to lax.fori_loop over pl.ds slices of xp
    # (bounded live ranges) or put time on a grid axis with h in VMEM scratch.
    # TODO(synk): pltpu.matmul_push_rhs/matmul_acc_lhs/matmul_pop could keep
    # W_hh^T resident in the MXU weight registers across the recurrence;
    # omitted here for portability across MXU generations.
    for t in range(1, seq_len):
        rec = jnp.dot(
            h.astype(jnp.bfloat16), whh_t_ref[...],
            preferred_element_type=jnp.float32,
        )
        h = jnp.maximum(xp[t * batch_padded:(t + 1) * batch_padded, :] + rec, 0.0)

    # Final fc on the last hidden state; (Bp, Cp) is a full aligned tile,
    # so this is an unmasked lane-dense store.
    out_ref[...] = (
        jnp.dot(h.astype(jnp.bfloat16), wfc_t_ref[...],
                preferred_element_type=jnp.float32)
        + bfc_ref[...]
    )


def make_rnn_classifier_forward(params):
    """Prepare kernel-ready parameter layouts ONCE and return a jitted forward:
    x (T, B, I) f32 -> logits (B, C) f32."""
    W_ih = jnp.asarray(params["W_ih"], jnp.float32)   # (H, I)
    W_hh = jnp.asarray(params["W_hh"], jnp.float32)   # (H, H)
    b_ih = jnp.asarray(params["b_ih"], jnp.float32)   # (H,)
    b_hh = jnp.asarray(params["b_hh"], jnp.float32)   # (H,)
    W_fc = jnp.asarray(params["W_fc"], jnp.float32)   # (C, H)
    b_fc = jnp.asarray(params["b_fc"], jnp.float32)   # (C,)

    H = W_ih.shape[0]
    C = W_fc.shape[0]
    C_pad = pl.cdiv(C, _LANE) * _LANE

    # One-time layout plumbing (hoisted out of the per-call path).
    wih_t = W_ih.T.astype(jnp.bfloat16)                                      # (I, H)
    whh_t = W_hh.T.astype(jnp.bfloat16)                                      # (H, H)
    b = (b_ih + b_hh).reshape(1, H)                                          # (1, H)  f32
    wfc_t = jnp.pad(W_fc.T, ((0, 0), (0, C_pad - C))).astype(jnp.bfloat16)   # (H, Cp)
    bfc = jnp.pad(b_fc.reshape(1, C), ((0, 0), (0, C_pad - C)))              # (1, Cp) f32

    @jax.jit
    def forward(x):
        T, B, I = x.shape
        B_pad = pl.cdiv(B, _SUBLANE) * _SUBLANE
        # Zero-pad batch to a sublane multiple; padded rows are garbage-in /
        # garbage-out and sliced off below.
        x2d = (
            jnp.pad(x, ((0, 0), (0, B_pad - B), (0, 0)))
            .astype(jnp.bfloat16)
            .reshape(T * B_pad, I)
        )

        kernel = functools.partial(
            rnn_classifier_kernel, seq_len=T, batch_padded=B_pad)

        # Single grid-less invocation: whole problem fits comfortably in VMEM.
        # TODO(synk): when scaling batch/seq, add a "parallel" batch grid axis
        # (uses v7x's second TensorCore) and re-budget the x2d/xp slab for
        # 64 MiB VMEM via pltpu.CompilerParams(vmem_limit_bytes=...).
        out_padded = pl.pallas_call(
            kernel,
            out_shape=jax.ShapeDtypeStruct((B_pad, C_pad), jnp.float32),
            in_specs=[pl.BlockSpec(memory_space=pltpu.MemorySpace.VMEM)] * 6,
            out_specs=pl.BlockSpec(memory_space=pltpu.MemorySpace.VMEM),
        )(x2d, wih_t, whh_t, b, wfc_t, bfc)

        return out_padded[:B, :C]

    return forward


def rnn_classifier_reference(x, params):
    """Pure-JAX reference mirroring the PyTorch forward.  Dot operands are cast
    to bf16 to match the kernel's (and the TPU MXU's) native matmul precision;
    accumulation stays f32."""
    W_ih, W_hh, b_ih, b_hh, W_fc, b_fc = (
        params["W_ih"], params["W_hh"], params["b_ih"],
        params["b_hh"], params["W_fc"], params["b_fc"],
    )
    T, B, _ = x.shape
    H = W_ih.shape[0]
    bf = jnp.bfloat16
    h = jnp.zeros((B, H), jnp.float32)
    for t in range(T):
        h = jax.nn.relu(
            jnp.dot(x[t].astype(bf), W_ih.T.astype(bf),
                    preferred_element_type=jnp.float32)
            + b_ih
            + jnp.dot(h.astype(bf), W_hh.T.astype(bf),
                      preferred_element_type=jnp.float32)
            + b_hh
        )
    return (
        jnp.dot(h.astype(bf), W_fc.T.astype(bf),
                preferred_element_type=jnp.float32)
        + b_fc
    )


if __name__ == "__main__":
    # Module hyperparameters (defaults of RNN_Classifier) at small test shapes.
    classes, input_size, hidden_size = 10, 28, 128
    seq_len, batch = 8, 2

    key = jax.random.PRNGKey(0)
    kx, k1, k2, k3, k4, k5, k6 = jax.random.split(key, 7)

    # Deterministic synthetic parameters (PyTorch-shaped: W_ih (H,I), W_hh (H,H),
    # biases (H,), fc W (C,H), fc b (C,)).  Uniform in +-1/sqrt(H) like nn.RNN init.
    bound = 1.0 / jnp.sqrt(jnp.float32(hidden_size))
    params = {
        "W_ih": jax.random.uniform(k1, (hidden_size, input_size), jnp.float32, -bound, bound),
        "W_hh": jax.random.uniform(k2, (hidden_size, hidden_size), jnp.float32, -bound, bound),
        "b_ih": jax.random.uniform(k3, (hidden_size,), jnp.float32, -bound, bound),
        "b_hh": jax.random.uniform(k4, (hidden_size,), jnp.float32, -bound, bound),
        "W_fc": jax.random.uniform(k5, (classes, hidden_size), jnp.float32, -bound, bound),
        "b_fc": jax.random.uniform(k6, (classes,), jnp.float32, -bound, bound),
    }

    # Input: (T, B, I) like PyTorch's default (seq_len, batch, input_size).
    x = jax.random.normal(kx, (seq_len, batch, input_size), jnp.float32)

    forward = make_rnn_classifier_forward(params)
    out = forward(x)
    out = jax.block_until_ready(out)

    ref = rnn_classifier_reference(x, params)
    assert out.shape == (batch, classes), f"bad output shape {out.shape}"
    assert jnp.allclose(out, ref, atol=1e-3, rtol=1e-3), "mismatch vs pure-JAX reference"

    print("KERNEL_OK")
</pallas_src>

<mosaic_0001>
module attributes {stable_mosaic.version = 11 : i64} {
  func.func @rnn_classifier_kernel(%arg0: memref<64x28xbf16, #tpu.memory_space<vmem>>, %arg1: memref<28x128xbf16, #tpu.memory_space<vmem>>, %arg2: memref<128x128xbf16, #tpu.memory_space<vmem>>, %arg3: memref<1x128xf32, #tpu.memory_space<vmem>>, %arg4: memref<128x128xbf16, #tpu.memory_space<vmem>>, %arg5: memref<1x128xf32, #tpu.memory_space<vmem>>, %arg6: memref<8x128xf32, #tpu.memory_space<vmem>>) attributes {dimension_semantics = [], scalar_prefetch = 0 : i64, scratch_operands = 0 : i64, tpu.core_type = #tpu.core_type<tc>} {
    %c0 = arith.constant 0 : index
    %c0_0 = arith.constant 0 : index
    %0 = vector.load %arg0[%c0, %c0_0] : memref<64x28xbf16, #tpu.memory_space<vmem>>, vector<64x28xbf16>
    %c0_1 = arith.constant 0 : index
    %c0_2 = arith.constant 0 : index
    %1 = vector.load %arg1[%c0_1, %c0_2] : memref<28x128xbf16, #tpu.memory_space<vmem>>, vector<28x128xbf16>
    %cst = arith.constant dense<0.000000e+00> : vector<64x128xf32>
    %2 = tpu.matmul %0, %1, %cst {dimension_numbers = #tpu.dot_dimension_numbers<[1], [0], [0], [1], [0, 0, 1, 1], [], []>} : vector<64x28xbf16>, vector<28x128xbf16>, vector<64x128xf32> -> vector<64x128xf32>
    %c0_3 = arith.constant 0 : index
    %c0_4 = arith.constant 0 : index
    %3 = vector.load %arg3[%c0_3, %c0_4] : memref<1x128xf32, #tpu.memory_space<vmem>>, vector<1x128xf32>
    %4 = vector.broadcast %3 : vector<1x128xf32> to vector<64x128xf32>
    %5 = arith.addf %2, %4 : vector<64x128xf32>
    %6 = vector.extract_strided_slice %5 {offsets = [0, 0], sizes = [8, 128], strides = [1, 1]} : vector<64x128xf32> to vector<8x128xf32>
    %cst_5 = arith.constant 0.000000e+00 : f32
    %7 = vector.broadcast %cst_5 : f32 to vector<8x128xf32>
    %8 = arith.maximumf %6, %7 : vector<8x128xf32>
    %9 = arith.truncf %8 : vector<8x128xf32> to vector<8x128xbf16>
    %c0_6 = arith.constant 0 : index
    %c0_7 = arith.constant 0 : index
    %10 = vector.load %arg2[%c0_6, %c0_7] : memref<128x128xbf16, #tpu.memory_space<vmem>>, vector<128x128xbf16>
    %cst_8 = arith.constant dense<0.000000e+00> : vector<8x128xf32>
    %11 = tpu.matmul %9, %10, %cst_8 {dimension_numbers = #tpu.dot_dimension_numbers<[1], [0], [0], [1], [0, 0, 1, 1], [], []>} : vector<8x128xbf16>, vector<128x128xbf16>, vector<8x128xf32> -> vector<8x128xf32>
    %12 = vector.extract_strided_slice %5 {offsets = [8, 0], sizes = [8, 128], strides = [1, 1]} : vector<64x128xf32> to vector<8x128xf32>
    %13 = arith.addf %12, %11 : vector<8x128xf32>
    %cst_9 = arith.constant 0.000000e+00 : f32
    %14 = vector.broadcast %cst_9 : f32 to vector<8x128xf32>
    %15 = arith.maximumf %13, %14 : vector<8x128xf32>
    %16 = arith.truncf %15 : vector<8x128xf32> to vector<8x128xbf16>
    %c0_10 = arith.constant 0 : index
    %c0_11 = arith.constant 0 : index
    %17 = vector.load %arg2[%c0_10, %c0_11] : memref<128x128xbf16, #tpu.memory_space<vmem>>, vector<128x128xbf16>
    %cst_12 = arith.constant dense<0.000000e+00> : vector<8x128xf32>
    %18 = tpu.matmul %16, %17, %cst_12 {dimension_numbers = #tpu.dot_dimension_numbers<[1], [0], [0], [1], [0, 0, 1, 1], [], []>} : vector<8x128xbf16>, vector<128x128xbf16>, vector<8x128xf32> -> vector<8x128xf32>
    %19 = vector.extract_strided_slice %5 {offsets = [16, 0], sizes = [8, 128], strides = [1, 1]} : vector<64x128xf32> to vector<8x128xf32>
    %20 = arith.addf %19, %18 : vector<8x128xf32>
    %cst_13 = arith.constant 0.000000e+00 : f32
    %21 = vector.broadcast %cst_13 : f32 to vector<8x128xf32>
    %22 = arith.maximumf %20, %21 : vector<8x128xf32>
    %23 = arith.truncf %22 : vector<8x128xf32> to vector<8x128xbf16>
    %c0_14 = arith.constant 0 : index
    %c0_15 = arith.constant 0 : index
    %24 = vector.load %arg2[%c0_14, %c0_15] : memref<128x128xbf16, #tpu.memory_space<vmem>>, vector<128x128xbf16>
    %cst_16 = arith.constant dense<0.000000e+00> : vector<8x128xf32>
    %25 = tpu.matmul %23, %24, %cst_16 {dimension_numbers = #tpu.dot_dimension_numbers<[1], [0], [0], [1], [0, 0, 1, 1], [], []>} : vector<8x128xbf16>, vector<128x128xbf16>, vector<8x128xf32> -> vector<8x128xf32>
    %26 = vector.extract_strided_slice %5 {offsets = [24, 0], sizes = [8, 128], strides = [1, 1]} : vector<64x128xf32> to vector<8x128xf32>
    %27 = arith.addf %26, %25 : vector<8x128xf32>
    %cst_17 = arith.constant 0.000000e+00 : f32
    %28 = vector.broadcast %cst_17 : f32 to vector<8x128xf32>
    %29 = arith.maximumf %27, %28 : vector<8x128xf32>
    %30 = arith.truncf %29 : vector<8x128xf32> to vector<8x128xbf16>
    %c0_18 = arith.constant 0 : index
    %c0_19 = arith.constant 0 : index
    %31 = vector.load %arg2[%c0_18, %c0_19] : memref<128x128xbf16, #tpu.memory_space<vmem>>, vector<128x128xbf16>
    %cst_20 = arith.constant dense<0.000000e+00> : vector<8x128xf32>
    %32 = tpu.matmul %30, %31, %cst_20 {dimension_numbers = #tpu.dot_dimension_numbers<[1], [0], [0], [1], [0, 0, 1, 1], [], []>} : vector<8x128xbf16>, vector<128x128xbf16>, vector<8x128xf32> -> vector<8x128xf32>
    %33 = vector.extract_strided_slice %5 {offsets = [32, 0], sizes = [8, 128], strides = [1, 1]} : vector<64x128xf32> to vector<8x128xf32>
    %34 = arith.addf %33, %32 : vector<8x128xf32>
    %cst_21 = arith.constant 0.000000e+00 : f32
    %35 = vector.broadcast %cst_21 : f32 to vector<8x128xf32>
    %36 = arith.maximumf %34, %35 : vector<8x128xf32>
    %37 = arith.truncf %36 : vector<8x128xf32> to vector<8x128xbf16>
    %c0_22 = arith.constant 0 : index
    %c0_23 = arith.constant 0 : index
    %38 = vector.load %arg2[%c0_22, %c0_23] : memref<128x128xbf16, #tpu.memory_space<vmem>>, vector<128x128xbf16>
    %cst_24 = arith.constant dense<0.000000e+00> : vector<8x128xf32>
    %39 = tpu.matmul %37, %38, %cst_24 {dimension_numbers = #tpu.dot_dimension_numbers<[1], [0], [0], [1], [0, 0, 1, 1], [], []>} : vector<8x128xbf16>, vector<128x128xbf16>, vector<8x128xf32> -> vector<8x128xf32>
    %40 = vector.extract_strided_slice %5 {offsets = [40, 0], sizes = [8, 128], strides = [1, 1]} : vector<64x128xf32> to vector<8x128xf32>
    %41 = arith.addf %40, %39 : vector<8x128xf32>
    %cst_25 = arith.constant 0.000000e+00 : f32
    %42 = vector.broadcast %cst_25 : f32 to vector<8x128xf32>
    %43 = arith.maximumf %41, %42 : vector<8x128xf32>
    %44 = arith.truncf %43 : vector<8x128xf32> to vector<8x128xbf16>
    %c0_26 = arith.constant 0 : index
    %c0_27 = arith.constant 0 : index
    %45 = vector.load %arg2[%c0_26, %c0_27] : memref<128x128xbf16, #tpu.memory_space<vmem>>, vector<128x128xbf16>
    %cst_28 = arith.constant dense<0.000000e+00> : vector<8x128xf32>
    %46 = tpu.matmul %44, %45, %cst_28 {dimension_numbers = #tpu.dot_dimension_numbers<[1], [0], [0], [1], [0, 0, 1, 1], [], []>} : vector<8x128xbf16>, vector<128x128xbf16>, vector<8x128xf32> -> vector<8x128xf32>
    %47 = vector.extract_strided_slice %5 {offsets = [48, 0], sizes = [8, 128], strides = [1, 1]} : vector<64x128xf32> to vector<8x128xf32>
    %48 = arith.addf %47, %46 : vector<8x128xf32>
    %cst_29 = arith.constant 0.000000e+00 : f32
    %49 = vector.broadcast %cst_29 : f32 to vector<8x128xf32>
    %50 = arith.maximumf %48, %49 : vector<8x128xf32>
    %51 = arith.truncf %50 : vector<8x128xf32> to vector<8x128xbf16>
    %c0_30 = arith.constant 0 : index
    %c0_31 = arith.constant 0 : index
    %52 = vector.load %arg2[%c0_30, %c0_31] : memref<128x128xbf16, #tpu.memory_space<vmem>>, vector<128x128xbf16>
    %cst_32 = arith.constant dense<0.000000e+00> : vector<8x128xf32>
    %53 = tpu.matmul %51, %52, %cst_32 {dimension_numbers = #tpu.dot_dimension_numbers<[1], [0], [0], [1], [0, 0, 1, 1], [], []>} : vector<8x128xbf16>, vector<128x128xbf16>, vector<8x128xf32> -> vector<8x128xf32>
    %54 = vector.extract_strided_slice %5 {offsets = [56, 0], sizes = [8, 128], strides = [1, 1]} : vector<64x128xf32> to vector<8x128xf32>
    %55 = arith.addf %54, %53 : vector<8x128xf32>
    %cst_33 = arith.constant 0.000000e+00 : f32
    %56 = vector.broadcast %cst_33 : f32 to vector<8x128xf32>
    %57 = arith.maximumf %55, %56 : vector<8x128xf32>
    %58 = arith.truncf %57 : vector<8x128xf32> to vector<8x128xbf16>
    %c0_34 = arith.constant 0 : index
    %c0_35 = arith.constant 0 : index
    %59 = vector.load %arg4[%c0_34, %c0_35] : memref<128x128xbf16, #tpu.memory_space<vmem>>, vector<128x128xbf16>
    %cst_36 = arith.constant dense<0.000000e+00> : vector<8x128xf32>
    %60 = tpu.matmul %58, %59, %cst_36 {dimension_numbers = #tpu.dot_dimension_numbers<[1], [0], [0], [1], [0, 0, 1, 1], [], []>} : vector<8x128xbf16>, vector<128x128xbf16>, vector<8x128xf32> -> vector<8x128xf32>
    %c0_37 = arith.constant 0 : index
    %c0_38 = arith.constant 0 : index
    %61 = vector.load %arg5[%c0_37, %c0_38] : memref<1x128xf32, #tpu.memory_space<vmem>>, vector<1x128xf32>
    %62 = vector.broadcast %61 : vector<1x128xf32> to vector<8x128xf32>
    %63 = arith.addf %60, %62 : vector<8x128xf32>
    %c0_39 = arith.constant 0 : index
    %c0_40 = arith.constant 0 : index
    %64 = vector.load %arg6[%c0_39, %c0_40] : memref<8x128xf32, #tpu.memory_space<vmem>>, vector<8x128xf32>
    tpu.vector_store %arg6[%c0_39, %c0_40], %63 {strides = array<i32>} : memref<8x128xf32, #tpu.memory_space<vmem>>, vector<8x128xf32>,
    return
  }
}

</mosaic_0001>

<llo_original>
// kernel: forward.1
$region0: #{forward.1}
  #allocation0 [shape = 'u32[]', space=smem, size = 0x4, offset = 0x4, fixed_abs, tag = 'smem constant byte address 0x4 - core index']
  #allocation1 [shape = 'u32[144,128]{1,0:T(1,128)}', space=vmem, size = 0x12000, scoped, tag = 'internal scratch']
  %s0 = inlined_call_operand.vmem [shape: bf16[64,28], index: 0, kind: input, shape index: {}]
  %s1 = inlined_call_operand.hbm [shape: bf16[28,128], index: 1, kind: input, shape index: {}]
  %s2 = inlined_call_operand.hbm [shape: bf16[128,128], index: 2, kind: input, shape index: {}]
  %s3 = inlined_call_operand.vmem [shape: f32[1,128], index: 3, kind: input, shape index: {}]
  %s4 = inlined_call_operand.vmem [shape: bf16[128,128], index: 4, kind: input, shape index: {}]
  %s5 = inlined_call_operand.vmem [shape: f32[1,128], index: 5, kind: input, shape index: {}]
  %s6 = inlined_call_operand.vmem [shape: f32[8,128], index: 6, kind: output, shape index: {}]
  %s7 = sld [smem:[#allocation0]]
  $region42: #{forward.1} parent=0
    _
  %s9 = ssub.s32 1, %s7
  %s10 = scalar_select 0, %s9, %s7
  $region1: #{forward.1} parent=0
    #allocation2 [shape = 'u8[8192]{0}', space=vmem, size = 0x2000, scoped, tag = 'input window, operand 1, single buffered']
    #allocation3 [shape = 's32[1]{0}', space=sflag, size = 0x4, scoped, tag = 'scoped memory for forward.1']
    #allocation4 [shape = 'u8[32768]{0}', space=vmem, size = 0x8000, scoped, tag = 'input window, operand 2, single buffered']
    #allocation5 [shape = 's32[1]{0}', space=sflag, size = 0x4, scoped, tag = 'scoped memory for forward.1']
    %11 = vsyncpa [#allocation3], 0
    %12 = vsyncpa [#allocation5], 0
    // Predicated region
    $region2: #{forward.1} parent=1 // pred_check
      _
    $region3: #{forward.1} parent=1 // pred_check_branch
      %14 = sbr.rel (0) target = $region5
    $region4: #{forward.1} parent=1 // pred_region
      _
    $region5: #{forward.1} parent=1 // pred_fallthru
      _
    // Predicated region
    $region6: #{forward.1} parent=1 // pred_check
      _
    $region7: #{forward.1} parent=1 // pred_check_branch
      %16 = sbr.rel (0) target = $region9
    $region8: #{forward.1} parent=1 // pred_region
      %s18 = ssub.s32 256, 256
      %19 = vsyncadd [#allocation3], %s18
      %s20 = sshll.u32 [#allocation2], 4
      %s21 = int_to_ptr.vmem [resolvable:$true] %s20
      %26 = dma.hbm_to_vmem [thread:$0]  %s1, 256, %s21, [#allocation3], 64, 64, 4
    $region9: #{forward.1} parent=1 // pred_fallthru
      _
    // Predicated region
    $region10: #{forward.1} parent=1 // pred_check
      _
    $region11: #{forward.1} parent=1 // pred_check_branch
      %28 = sbr.rel (0) target = $region13
    $region12: #{forward.1} parent=1 // pred_region
      %s30 = ssub.s32 1024, 1024
      %31 = vsyncadd [#allocation5], %s30
      %s32 = sshll.u32 [#allocation4], 4
      %s33 = int_to_ptr.vmem [resolvable:$true] %s32
      %38 = dma.hbm_to_vmem [thread:$0]  %s2, 1024, %s33, [#allocation5], 64, 64, 4
    $region13: #{forward.1} parent=1 // pred_fallthru
      _
    // Predicated region
    $region14: #{forward.1} parent=1 // pred_check
      _
    $region15: #{forward.1} parent=1 // pred_check_branch
      %40 = sbr.rel (0) target = $region17
    $region16: #{forward.1} parent=1 // pred_region
      _
    $region17: #{forward.1} parent=1 // pred_fallthru
      _
    // Predicated region
    $region18: #{forward.1} parent=1 // pred_check
      _
    $region19: #{forward.1} parent=1 // pred_check_branch
      %42 = sbr.rel (0) target = $region21
    $region20: #{forward.1} parent=1 // pred_region
      _
    $region21: #{forward.1} parent=1 // pred_fallthru
      _
    // Predicated region
    $region22: #{forward.1} parent=1 // pred_check
      _
    $region23: #{forward.1} parent=1 // pred_check_branch
      %44 = sbr.rel (0) target = $region25
    $region24: #{forward.1} parent=1 // pred_region
      _
    $region25: #{forward.1} parent=1 // pred_fallthru
      _
    // Predicated region
    $region26: #{forward.1} parent=1 // pred_check
      _
    $region27: #{forward.1} parent=1 // pred_check_branch
      %46 = sbr.rel (0) target = $region29
    $region28: #{forward.1} parent=1 // pred_region
      %47 = dma.done [#allocation3], 256
    $region29: #{forward.1} parent=1 // pred_fallthru
      _
    // Predicated region
    $region30: #{forward.1} parent=1 // pred_check
      _
    $region31: #{forward.1} parent=1 // pred_check_branch
      %49 = sbr.rel (0) target = $region33
    $region32: #{forward.1} parent=1 // pred_region
      %50 = dma.done [#allocation5], 1024
    $region33: #{forward.1} parent=1 // pred_fallthru
      _
    %v52 = vld [vmem:[%s0] sm:$0xf]
    %v53 = vld [vmem:[%s0 + $0x4] sm:$0xf]
    %v54 = vld [vmem:[%s0 + $0x8] sm:$0xf]
    %v55 = vld [vmem:[%s0 + $0xc] sm:$0xf]
    %v56 = vld [vmem:[%s0 + $0x10] sm:$0xf]
    %v57 = vld [vmem:[%s0 + $0x14] sm:$0xf]
    %v58 = vld [vmem:[%s0 + $0x18] sm:$0xf]
    %v59 = vld [vmem:[%s0 + $0x1c] sm:$0xf]
    %v60 = vld [vmem:[#allocation2] sm:$0xf]
    %v61 = vld [vmem:[#allocation2 + $0x4] sm:$0xf]
    %v62 = vld [vmem:[#allocation2 + $0x8] sm:$0xf]
    %v63 = vld [vmem:[#allocation2 + $0xc] sm:$0x3]
    %v64 = vld [vmem:[%s3] sm:$0x1]
    %v66 = vlaneseq
    %v67 = vshrl.u32 %v66, 7
    %v68 = vsub.s32 0, %v67
    %v69 = vrot.slane %v64, %v68
    %v79 = vunpack.c.l.b16 %v52
    %v80 = vunpack.c.l.b16 %v53
    %v81 = vunpack.c.l.b16 %v54
    %v82 = vunpack.c.l.b16 %v55
    %v83 = vunpack.c.l.b16 %v56
    %v84 = vunpack.c.l.b16 %v57
    %v85 = vunpack.c.l.b16 %v58
    %v86 = vunpack.c.l.b16 %v59
    %v87 = vpack.c.b16 %v80, %v79
    %v88 = vpack.c.b16 %v82, %v81
    %v89 = vpack.c.b16 %v84, %v83
    %v90 = vpack.c.b16 %v86, %v85
    %v95 = vunpack.c.l.b16 %v60
    %v96 = vunpack.c.l.b16 %v61
    %v97 = vunpack.c.l.b16 %v62
    %v98 = vunpack.c.l.b16 %v63
    %v99 = vpack.c.b16 %v96, %v95
    %v100 = vpack.c.b16 %v98, %v97
    %vm102 = vcmask 228352
    %v104 = vsel %vm102, %v87, 0
    %v107 = vsel %vm102, %v88, 0
    %v110 = vsel %vm102, %v89, 0
    %v113 = vsel %vm102, %v90, 0
    %vm115 = vcmask 1045504
    %v117 = vsel %vm115, %v100, 0
    %119 = vmatprep.subr.bf16.mxu0 0
    %120 = vmatpush1.bf16.msra.mxu0 0
    %121 = vmatprep.subr.bf16.mxu0 0
    %122 = vmatpush1.bf16.msra.mxu0 0
    %123 = vmatprep.subr.bf16.mxu0 0
    %124 = vmatpush1.bf16.msra.mxu0 0
    %125 = vmatprep.subr.bf16.mxu0 0
    %126 = vmatpush1.bf16.msra.mxu0 0
    %127 = vmatprep.subr.bf16.mxu0 0
    %128 = vmatpush1.bf16.msra.mxu0 0
    %129 = vmatprep.subr.bf16.mxu0 0
    %130 = vmatpush1.bf16.msra.mxu0 0
    %131 = vmatprep.subr.bf16.mxu0 0
    %132 = vmatpush1.bf16.msra.mxu0 %v117
    %133 = vmatprep.subr.bf16.mxu0 0
    %134 = vmatpush1.bf16.msra.mxu0 %v99
    %135 = vmatprep.subr.bf16.mxu0 0
    %136 = vmatpush2.bf16.msra.mxu0 0
    %137 = vmatprep.subr.bf16.mxu0 0
    %138 = vmatpush2.bf16.msra.mxu0 0
    %139 = vmatprep.subr.bf16.mxu0 0
    %140 = vmatpush2.bf16.msra.mxu0 0
    %141 = vmatprep.subr.bf16.mxu0 0
    %142 = vmatpush2.bf16.msra.mxu0 0
    %143 = vmatprep.subr.bf16.mxu0 0
    %144 = vmatpush2.bf16.msra.mxu0 0
    %145 = vmatprep.subr.bf16.mxu0 0
    %146 = vmatpush2.bf16.msra.mxu0 0
    %147 = vmatprep.subr.bf16.mxu0 0
    %148 = vmatpush2.bf16.msra.mxu0 0
    %149 = vmatprep.subr.bf16.mxu0 0
    %150 = vmatpush2.bf16.msra.mxu0 0
    %151 = vmatprep.mubr.bf16.mxu0 0
    %152 = vmatmul.mubr.bf16.gmra.mxu0 %v104
    %v153 = vpop.f32.mrf.mxu0
    %v154 = vadd.f32 %v69, %v153
    %v155 = vpop.f32.mrf.mxu0
    %v156 = vpop.f32.mrf.mxu0
    %v157 = vadd.f32 %v69, %v156
    %v158 = vpop.f32.mrf.mxu0
    %159 = vmatprep.mubr.bf16.mxu0 0
    %160 = vmatmul.mubr.bf16.gmra.mxu0 %v107
    %v161 = vpop.f32.mrf.mxu0
    %v162 = vadd.f32 %v69, %v161
    %v163 = vpop.f32.mrf.mxu0
    %v164 = vpop.f32.mrf.mxu0
    %v165 = vadd.f32 %v69, %v164
    %v166 = vpop.f32.mrf.mxu0
    %167 = vmatprep.mubr.bf16.mxu0 0
    %168 = vmatmul.mubr.bf16.gmra.mxu0 %v110
    %v169 = vpop.f32.mrf.mxu0
    %v170 = vadd.f32 %v69, %v169
    %v171 = vpop.f32.mrf.mxu0
    %v172 = vpop.f32.mrf.mxu0
    %v173 = vadd.f32 %v69, %v172
    %v174 = vpop.f32.mrf.mxu0
    %175 = vmatprep.mubr.bf16.mxu0 0
    %176 = vmatmul.mubr.bf16.gmra.mxu0 %v113
    %v177 = vpop.f32.mrf.mxu0
    %v178 = vadd.f32 %v69, %v177
    %v179 = vpop.f32.mrf.mxu0
    %v180 = vpop.f32.mrf.mxu0
    %v181 = vadd.f32 %v69, %v180
    %v182 = vpop.f32.mrf.mxu0
    %183 = vdwg.mxu0
    %v184 = vmax.f32 %v154, 0.0
    %v185 = vpack.c.bf16 %v184, %v184
    %v186 = vld [vmem:[#allocation4] sm:$0xf]
    %v187 = vld [vmem:[#allocation4 + $0x4] sm:$0xf]
    %v188 = vld [vmem:[#allocation4 + $0x8] sm:$0xf]
    %v189 = vld [vmem:[#allocation4 + $0xc] sm:$0xf]
    %v190 = vld [vmem:[#allocation4 + $0x10] sm:$0xf]
    %v191 = vld [vmem:[#allocation4 + $0x14] sm:$0xf]
    %v192 = vld [vmem:[#allocation4 + $0x18] sm:$0xf]
    %v193 = vld [vmem:[#allocation4 + $0x1c] sm:$0xf]
    %v194 = vld [vmem:[#allocation4 + $0x20] sm:$0xf]
    %v195 = vld [vmem:[#allocation4 + $0x24] sm:$0xf]
    %v196 = vld [vmem:[#allocation4 + $0x28] sm:$0xf]
    %v197 = vld [vmem:[#allocation4 + $0x2c] sm:$0xf]
    %v198 = vld [vmem:[#allocation4 + $0x30] sm:$0xf]
    %v199 = vld [vmem:[#allocation4 + $0x34] sm:$0xf]
    %v200 = vld [vmem:[#allocation4 + $0x38] sm:$0xf]
    %v201 = vld [vmem:[#allocation4 + $0x3c] sm:$0xf]
    %v218 = vunpack.c.l.b16 %v186
    %v219 = vunpack.c.l.b16 %v187
    %v220 = vunpack.c.l.b16 %v188
    %v221 = vunpack.c.l.b16 %v189
    %v222 = vunpack.c.l.b16 %v190
    %v223 = vunpack.c.l.b16 %v191
    %v224 = vunpack.c.l.b16 %v192
    %v225 = vunpack.c.l.b16 %v193
    %v226 = vunpack.c.l.b16 %v194
    %v227 = vunpack.c.l.b16 %v195
    %v228 = vunpack.c.l.b16 %v196
    %v229 = vunpack.c.l.b16 %v197
    %v230 = vunpack.c.l.b16 %v198
    %v231 = vunpack.c.l.b16 %v199
    %v232 = vunpack.c.l.b16 %v200
    %v233 = vunpack.c.l.b16 %v201
    %v234 = vpack.c.b16 %v219, %v218
    %v235 = vpack.c.b16 %v221, %v220
    %v236 = vpack.c.b16 %v223, %v222
    %v237 = vpack.c.b16 %v225, %v224
    %v238 = vpack.c.b16 %v227, %v226
    %v239 = vpack.c.b16 %v229, %v228
    %v240 = vpack.c.b16 %v231, %v230
    %v241 = vpack.c.b16 %v233, %v232
    %250 = vmatprep.subr.bf16.mxu0 0
    %251 = vmatpush1.bf16.msra.mxu0 %v241
    %252 = vmatprep.subr.bf16.mxu0 0
    %253 = vmatpush1.bf16.msra.mxu0 %v240
    %254 = vmatprep.subr.bf16.mxu0 0
    %255 = vmatpush1.bf16.msra.mxu0 %v239
    %256 = vmatprep.subr.bf16.mxu0 0
    %257 = vmatpush1.bf16.msra.mxu0 %v238
    %258 = vmatprep.subr.bf16.mxu0 0
    %259 = vmatpush1.bf16.msra.mxu0 %v237
    %260 = vmatprep.subr.bf16.mxu0 0
    %261 = vmatpush1.bf16.msra.mxu0 %v236
    %262 = vmatprep.subr.bf16.mxu0 0
    %263 = vmatpush1.bf16.msra.mxu0 %v235
    %264 = vmatprep.subr.bf16.mxu0 0
    %265 = vmatpush1.bf16.msra.mxu0 %v234
    %266 = vmatprep.subr.bf16.mxu0 0
    %267 = vmatpush2.bf16.msra.mxu0 0
    %268 = vmatprep.subr.bf16.mxu0 0
    %269 = vmatpush2.bf16.msra.mxu0 0
    %270 = vmatprep.subr.bf16.mxu0 0
    %271 = vmatpush2.bf16.msra.mxu0 0
    %272 = vmatprep.subr.bf16.mxu0 0
    %273 = vmatpush2.bf16.msra.mxu0 0
    %274 = vmatprep.subr.bf16.mxu0 0
    %275 = vmatpush2.bf16.msra.mxu0 0
    %276 = vmatprep.subr.bf16.mxu0 0
    %277 = vmatpush2.bf16.msra.mxu0 0
    %278 = vmatprep.subr.bf16.mxu0 0
    %279 = vmatpush2.bf16.msra.mxu0 0
    %280 = vmatprep.subr.bf16.mxu0 0
    %281 = vmatpush2.bf16.msra.mxu0 0
    %282 = vmatprep.mubr.bf16.mxu0 0
    %283 = vmatmul.mubr.bf16.gmra.mxu0 %v185
    %v284 = vpop.f32.mrf.mxu0
    %v285 = vadd.f32 0.0, %v284
    %v286 = vpop.f32.mrf.mxu0
    %v287 = vpop.f32.mrf.mxu0
    %v288 = vpop.f32.mrf.mxu0
    %289 = vdwg.mxu0
    %v290 = vadd.f32 %v157, %v285
    %v291 = vmax.f32 %v290, 0.0
    %v292 = vpack.c.bf16 %v291, %v291
    %293 = vmatprep.subr.bf16.mxu0 0
    %294 = vmatpush1.bf16.msra.mxu0 %v241
    %295 = vmatprep.subr.bf16.mxu0 0
    %296 = vmatpush1.bf16.msra.mxu0 %v240
    %297 = vmatprep.subr.bf16.mxu0 0
    %298 = vmatpush1.bf16.msra.mxu0 %v239
    %299 = vmatprep.subr.bf16.mxu0 0
    %300 = vmatpush1.bf16.msra.mxu0 %v238
    %301 = vmatprep.subr.bf16.mxu0 0
    %302 = vmatpush1.bf16.msra.mxu0 %v237
    %303 = vmatprep.subr.bf16.mxu0 0
    %304 = vmatpush1.bf16.msra.mxu0 %v236
    %305 = vmatprep.subr.bf16.mxu0 0
    %306 = vmatpush1.bf16.msra.mxu0 %v235
    %307 = vmatprep.subr.bf16.mxu0 0
    %308 = vmatpush1.bf16.msra.mxu0 %v234
    %309 = vmatprep.subr.bf16.mxu0 0
    %310 = vmatpush2.bf16.msra.mxu0 0
    %311 = vmatprep.subr.bf16.mxu0 0
    %312 = vmatpush2.bf16.msra.mxu0 0
    %313 = vmatprep.subr.bf16.mxu0 0
    %314 = vmatpush2.bf16.msra.mxu0 0
    %315 = vmatprep.subr.bf16.mxu0 0
    %316 = vmatpush2.bf16.msra.mxu0 0
    %317 = vmatprep.subr.bf16.mxu0 0
    %318 = vmatpush2.bf16.msra.mxu0 0
    %319 = vmatprep.subr.bf16.mxu0 0
    %320 = vmatpush2.bf16.msra.mxu0 0
    %321 = vmatprep.subr.bf16.mxu0 0
    %322 = vmatpush2.bf16.msra.mxu0 0
    %323 = vmatprep.subr.bf16.mxu0 0
    %324 = vmatpush2.bf16.msra.mxu0 0
    %325 = vmatprep.mubr.bf16.mxu0 0
    %326 = vmatmul.mubr.bf16.gmra.mxu0 %v292
    %v327 = vpop.f32.mrf.mxu0
    %v328 = vadd.f32 0.0, %v327
    %v329 = vpop.f32.mrf.mxu0
    %v330 = vpop.f32.mrf.mxu0
    %v331 = vpop.f32.mrf.mxu0
    %332 = vdwg.mxu0
    %v333 = vadd.f32 %v162, %v328
    %v334 = vmax.f32 %v333, 0.0
    %v335 = vpack.c.bf16 %v334, %v334
    %336 = vmatprep.subr.bf16.mxu0 0
    %337 = vmatpush1.bf16.msra.mxu0 %v241
    %338 = vmatprep.subr.bf16.mxu0 0
    %339 = vmatpush1.bf16.msra.mxu0 %v240
    %340 = vmatprep.subr.bf16.mxu0 0
    %341 = vmatpush1.bf16.msra.mxu0 %v239
    %342 = vmatprep.subr.bf16.mxu0 0
    %343 = vmatpush1.bf16.msra.mxu0 %v238
    %344 = vmatprep.subr.bf16.mxu0 0
    %345 = vmatpush1.bf16.msra.mxu0 %v237
    %346 = vmatprep.subr.bf16.mxu0 0
    %347 = vmatpush1.bf16.msra.mxu0 %v236
    %348 = vmatprep.subr.bf16.mxu0 0
    %349 = vmatpush1.bf16.msra.mxu0 %v235
    %350 = vmatprep.subr.bf16.mxu0 0
    %351 = vmatpush1.bf16.msra.mxu0 %v234
    %352 = vmatprep.subr.bf16.mxu0 0
    %353 = vmatpush2.bf16.msra.mxu0 0
    %354 = vmatprep.subr.bf16.mxu0 0
    %355 = vmatpush2.bf16.msra.mxu0 0
    %356 = vmatprep.subr.bf16.mxu0 0
    %357 = vmatpush2.bf16.msra.mxu0 0
    %358 = vmatprep.subr.bf16.mxu0 0
    %359 = vmatpush2.bf16.msra.mxu0 0
    %360 = vmatprep.subr.bf16.mxu0 0
    %361 = vmatpush2.bf16.msra.mxu0 0
    %362 = vmatprep.subr.bf16.mxu0 0
    %363 = vmatpush2.bf16.msra.mxu0 0
    %364 = vmatprep.subr.bf16.mxu0 0
    %365 = vmatpush2.bf16.msra.mxu0 0
    %366 = vmatprep.subr.bf16.mxu0 0
    %367 = vmatpush2.bf16.msra.mxu0 0
    %368 = vmatprep.mubr.bf16.mxu0 0
    %369 = vmatmul.mubr.bf16.gmra.mxu0 %v335
    %v370 = vpop.f32.mrf.mxu0
    %v371 = vadd.f32 0.0, %v370
    %v372 = vpop.f32.mrf.mxu0
    %v373 = vpop.f32.mrf.mxu0
    %v374 = vpop.f32.mrf.mxu0
    %375 = vdwg.mxu0
    %v376 = vadd.f32 %v165, %v371
    %v377 = vmax.f32 %v376, 0.0
    %v378 = vpack.c.bf16 %v377, %v377
    %379 = vmatprep.subr.bf16.mxu0 0
    %380 = vmatpush1.bf16.msra.mxu0 %v241
    %381 = vmatprep.subr.bf16.mxu0 0
    %382 = vmatpush1.bf16.msra.mxu0 %v240
    %383 = vmatprep.subr.bf16.mxu0 0
    %384 = vmatpush1.bf16.msra.mxu0 %v239
    %385 = vmatprep.subr.bf16.mxu0 0
    %386 = vmatpush1.bf16.msra.mxu0 %v238
    %387 = vmatprep.subr.bf16.mxu0 0
    %388 = vmatpush1.bf16.msra.mxu0 %v237
    %389 = vmatprep.subr.bf16.mxu0 0
    %390 = vmatpush1.bf16.msra.mxu0 %v236
    %391 = vmatprep.subr.bf16.mxu0 0
    %392 = vmatpush1.bf16.msra.mxu0 %v235
    %393 = vmatprep.subr.bf16.mxu0 0
    %394 = vmatpush1.bf16.msra.mxu0 %v234
    %395 = vmatprep.subr.bf16.mxu0 0
    %396 = vmatpush2.bf16.msra.mxu0 0
    %397 = vmatprep.subr.bf16.mxu0 0
    %398 = vmatpush2.bf16.msra.mxu0 0
    %399 = vmatprep.subr.bf16.mxu0 0
    %400 = vmatpush2.bf16.msra.mxu0 0
    %401 = vmatprep.subr.bf16.mxu0 0
    %402 = vmatpush2.bf16.msra.mxu0 0
    %403 = vmatprep.subr.bf16.mxu0 0
    %404 = vmatpush2.bf16.msra.mxu0 0
    %405 = vmatprep.subr.bf16.mxu0 0
    %406 = vmatpush2.bf16.msra.mxu0 0
    %407 = vmatprep.subr.bf16.mxu0 0
    %408 = vmatpush2.bf16.msra.mxu0 0
    %409 = vmatprep.subr.bf16.mxu0 0
    %410 = vmatpush2.bf16.msra.mxu0 0
    %411 = vmatprep.mubr.bf16.mxu0 0
    %412 = vmatmul.mubr.bf16.gmra.mxu0 %v378
    %v413 = vpop.f32.mrf.mxu0
    %v414 = vadd.f32 0.0, %v413
    %v415 = vpop.f32.mrf.mxu0
    %v416 = vpop.f32.mrf.mxu0
    %v417 = vpop.f32.mrf.mxu0
    %418 = vdwg.mxu0
    %v419 = vadd.f32 %v170, %v414
    %v420 = vmax.f32 %v419, 0.0
    %v421 = vpack.c.bf16 %v420, %v420
    %422 = vmatprep.subr.bf16.mxu0 0
    %423 = vmatpush1.bf16.msra.mxu0 %v241
    %424 = vmatprep.subr.bf16.mxu0 0
    %425 = vmatpush1.bf16.msra.mxu0 %v240
    %426 = vmatprep.subr.bf16.mxu0 0
    %427 = vmatpush1.bf16.msra.mxu0 %v239
    %428 = vmatprep.subr.bf16.mxu0 0
    %429 = vmatpush1.bf16.msra.mxu0 %v238
    %430 = vmatprep.subr.bf16.mxu0 0
    %431 = vmatpush1.bf16.msra.mxu0 %v237
    %432 = vmatprep.subr.bf16.mxu0 0
    %433 = vmatpush1.bf16.msra.mxu0 %v236
    %434 = vmatprep.subr.bf16.mxu0 0
    %435 = vmatpush1.bf16.msra.mxu0 %v235
    %436 = vmatprep.subr.bf16.mxu0 0
    %437 = vmatpush1.bf16.msra.mxu0 %v234
    %438 = vmatprep.subr.bf16.mxu0 0
    %439 = vmatpush2.bf16.msra.mxu0 0
    %440 = vmatprep.subr.bf16.mxu0 0
    %441 = vmatpush2.bf16.msra.mxu0 0
    %442 = vmatprep.subr.bf16.mxu0 0
    %443 = vmatpush2.bf16.msra.mxu0 0
    %444 = vmatprep.subr.bf16.mxu0 0
    %445 = vmatpush2.bf16.msra.mxu0 0
    %446 = vmatprep.subr.bf16.mxu0 0
    %447 = vmatpush2.bf16.msra.mxu0 0
    %448 = vmatprep.subr.bf16.mxu0 0
    %449 = vmatpush2.bf16.msra.mxu0 0
    %450 = vmatprep.subr.bf16.mxu0 0
    %451 = vmatpush2.bf16.msra.mxu0 0
    %452 = vmatprep.subr.bf16.mxu0 0
    %453 = vmatpush2.bf16.msra.mxu0 0
    %454 = vmatprep.mubr.bf16.mxu0 0
    %455 = vmatmul.mubr.bf16.gmra.mxu0 %v421
    %v456 = vpop.f32.mrf.mxu0
    %v457 = vadd.f32 0.0, %v456
    %v458 = vpop.f32.mrf.mxu0
    %v459 = vpop.f32.mrf.mxu0
    %v460 = vpop.f32.mrf.mxu0
    %461 = vdwg.mxu0
    %v462 = vadd.f32 %v173, %v457
    %v463 = vmax.f32 %v462, 0.0
    %v464 = vpack.c.bf16 %v463, %v463
    %465 = vmatprep.subr.bf16.mxu0 0
    %466 = vmatpush1.bf16.msra.mxu0 %v241
    %467 = vmatprep.subr.bf16.mxu0 0
    %468 = vmatpush1.bf16.msra.mxu0 %v240
    %469 = vmatprep.subr.bf16.mxu0 0
    %470 = vmatpush1.bf16.msra.mxu0 %v239
    %471 = vmatprep.subr.bf16.mxu0 0
    %472 = vmatpush1.bf16.msra.mxu0 %v238
    %473 = vmatprep.subr.bf16.mxu0 0
    %474 = vmatpush1.bf16.msra.mxu0 %v237
    %475 = vmatprep.subr.bf16.mxu0 0
    %476 = vmatpush1.bf16.msra.mxu0 %v236
    %477 = vmatprep.subr.bf16.mxu0 0
    %478 = vmatpush1.bf16.msra.mxu0 %v235
    %479 = vmatprep.subr.bf16.mxu0 0
    %480 = vmatpush1.bf16.msra.mxu0 %v234
    %481 = vmatprep.subr.bf16.mxu0 0
    %482 = vmatpush2.bf16.msra.mxu0 0
    %483 = vmatprep.subr.bf16.mxu0 0
    %484 = vmatpush2.bf16.msra.mxu0 0
    %485 = vmatprep.subr.bf16.mxu0 0
    %486 = vmatpush2.bf16.msra.mxu0 0
    %487 = vmatprep.subr.bf16.mxu0 0
    %488 = vmatpush2.bf16.msra.mxu0 0
    %489 = vmatprep.subr.bf16.mxu0 0
    %490 = vmatpush2.bf16.msra.mxu0 0
    %491 = vmatprep.subr.bf16.mxu0 0
    %492 = vmatpush2.bf16.msra.mxu0 0
    %493 = vmatprep.subr.bf16.mxu0 0
    %494 = vmatpush2.bf16.msra.mxu0 0
    %495 = vmatprep.subr.bf16.mxu0 0
    %496 = vmatpush2.bf16.msra.mxu0 0
    %497 = vmatprep.mubr.bf16.mxu0 0
    %498 = vmatmul.mubr.bf16.gmra.mxu0 %v464
    %v499 = vpop.f32.mrf.mxu0
    %v500 = vadd.f32 0.0, %v499
    %v501 = vpop.f32.mrf.mxu0
    %v502 = vpop.f32.mrf.mxu0
    %v503 = vpop.f32.mrf.mxu0
    %504 = vdwg.mxu0
    %v505 = vadd.f32 %v178, %v500
    %v506 = vmax.f32 %v505, 0.0
    %v507 = vpack.c.bf16 %v506, %v506
    %508 = vmatprep.subr.bf16.mxu0 0
    %509 = vmatpush1.bf16.msra.mxu0 %v241
    %510 = vmatprep.subr.bf16.mxu0 0
    %511 = vmatpush1.bf16.msra.mxu0 %v240
    %512 = vmatprep.subr.bf16.mxu0 0
    %513 = vmatpush1.bf16.msra.mxu0 %v239
    %514 = vmatprep.subr.bf16.mxu0 0
    %515 = vmatpush1.bf16.msra.mxu0 %v238
    %516 = vmatprep.subr.bf16.mxu0 0
    %517 = vmatpush1.bf16.msra.mxu0 %v237
    %518 = vmatprep.subr.bf16.mxu0 0
    %519 = vmatpush1.bf16.msra.mxu0 %v236
    %520 = vmatprep.subr.bf16.mxu0 0
    %521 = vmatpush1.bf16.msra.mxu0 %v235
    %522 = vmatprep.subr.bf16.mxu0 0
    %523 = vmatpush1.bf16.msra.mxu0 %v234
    %524 = vmatprep.subr.bf16.mxu0 0
    %525 = vmatpush2.bf16.msra.mxu0 0
    %526 = vmatprep.subr.bf16.mxu0 0
    %527 = vmatpush2.bf16.msra.mxu0 0
    %528 = vmatprep.subr.bf16.mxu0 0
    %529 = vmatpush2.bf16.msra.mxu0 0
    %530 = vmatprep.subr.bf16.mxu0 0
    %531 = vmatpush2.bf16.msra.mxu0 0
    %532 = vmatprep.subr.bf16.mxu0 0
    %533 = vmatpush2.bf16.msra.mxu0 0
    %534 = vmatprep.subr.bf16.mxu0 0
    %535 = vmatpush2.bf16.msra.mxu0 0
    %536 = vmatprep.subr.bf16.mxu0 0
    %537 = vmatpush2.bf16.msra.mxu0 0
    %538 = vmatprep.subr.bf16.mxu0 0
    %539 = vmatpush2.bf16.msra.mxu0 0
    %540 = vmatprep.mubr.bf16.mxu0 0
    %541 = vmatmul.mubr.bf16.gmra.mxu0 %v507
    %v542 = vpop.f32.mrf.mxu0
    %v543 = vadd.f32 0.0, %v542
    %v544 = vpop.f32.mrf.mxu0
    %v545 = vpop.f32.mrf.mxu0
    %v546 = vpop.f32.mrf.mxu0
    %547 = vdwg.mxu0
    %v548 = vadd.f32 %v181, %v543
    %v549 = vmax.f32 %v548, 0.0
    %v550 = vpack.c.bf16 %v549, %v549
    %v551 = vld [vmem:[%s4] sm:$0xf]
    %v552 = vld [vmem:[%s4 + $0x4] sm:$0xf]
    %v553 = vld [vmem:[%s4 + $0x8] sm:$0xf]
    %v554 = vld [vmem:[%s4 + $0xc] sm:$0xf]
    %v555 = vld [vmem:[%s4 + $0x10] sm:$0xf]
    %v556 = vld [vmem:[%s4 + $0x14] sm:$0xf]
    %v557 = vld [vmem:[%s4 + $0x18] sm:$0xf]
    %v558 = vld [vmem:[%s4 + $0x1c] sm:$0xf]
    %v559 = vld [vmem:[%s4 + $0x20] sm:$0xf]
    %v560 = vld [vmem:[%s4 + $0x24] sm:$0xf]
    %v561 = vld [vmem:[%s4 + $0x28] sm:$0xf]
    %v562 = vld [vmem:[%s4 + $0x2c] sm:$0xf]
    %v563 = vld [vmem:[%s4 + $0x30] sm:$0xf]
    %v564 = vld [vmem:[%s4 + $0x34] sm:$0xf]
    %v565 = vld [vmem:[%s4 + $0x38] sm:$0xf]
    %v566 = vld [vmem:[%s4 + $0x3c] sm:$0xf]
    %v567 = vld [vmem:[%s5] sm:$0x1]
    %v569 = vlaneseq
    %v570 = vshrl.u32 %v569, 7
    %v571 = vsub.s32 0, %v570
    %v572 = vrot.slane %v567, %v571
    %v590 = vunpack.c.l.b16 %v551
    %v591 = vunpack.c.l.b16 %v552
    %v592 = vunpack.c.l.b16 %v553
    %v593 = vunpack.c.l.b16 %v554
    %v594 = vunpack.c.l.b16 %v555
    %v595 = vunpack.c.l.b16 %v556
    %v596 = vunpack.c.l.b16 %v557
    %v597 = vunpack.c.l.b16 %v558
    %v598 = vunpack.c.l.b16 %v559
    %v599 = vunpack.c.l.b16 %v560
    %v600 = vunpack.c.l.b16 %v561
    %v601 = vunpack.c.l.b16 %v562
    %v602 = vunpack.c.l.b16 %v563
    %v603 = vunpack.c.l.b16 %v564
    %v604 = vunpack.c.l.b16 %v565
    %v605 = vunpack.c.l.b16 %v566
    %v606 = vpack.c.b16 %v591, %v590
    %v607 = vpack.c.b16 %v593, %v592
    %v608 = vpack.c.b16 %v595, %v594
    %v609 = vpack.c.b16 %v597, %v596
    %v610 = vpack.c.b16 %v599, %v598
    %v611 = vpack.c.b16 %v601, %v600
    %v612 = vpack.c.b16 %v603, %v602
    %v613 = vpack.c.b16 %v605, %v604
    %622 = vmatprep.subr.bf16.mxu0 0
    %623 = vmatpush1.bf16.msra.mxu0 %v613
    %624 = vmatprep.subr.bf16.mxu0 0
    %625 = vmatpush1.bf16.msra.mxu0 %v612
    %626 = vmatprep.subr.bf16.mxu0 0
    %627 = vmatpush1.bf16.msra.mxu0 %v611
    %628 = vmatprep.subr.bf16.mxu0 0
    %629 = vmatpush1.bf16.msra.mxu0 %v610
    %630 = vmatprep.subr.bf16.mxu0 0
    %631 = vmatpush1.bf16.msra.mxu0 %v609
    %632 = vmatprep.subr.bf16.mxu0 0
    %633 = vmatpush1.bf16.msra.mxu0 %v608
    %634 = vmatprep.subr.bf16.mxu0 0
    %635 = vmatpush1.bf16.msra.mxu0 %v607
    %636 = vmatprep.subr.bf16.mxu0 0
    %637 = vmatpush1.bf16.msra.mxu0 %v606
    %638 = vmatprep.subr.bf16.mxu0 0
    %639 = vmatpush2.bf16.msra.mxu0 0
    %640 = vmatprep.subr.bf16.mxu0 0
    %641 = vmatpush2.bf16.msra.mxu0 0
    %642 = vmatprep.subr.bf16.mxu0 0
    %643 = vmatpush2.bf16.msra.mxu0 0
    %644 = vmatprep.subr.bf16.mxu0 0
    %645 = vmatpush2.bf16.msra.mxu0 0
    %646 = vmatprep.subr.bf16.mxu0 0
    %647 = vmatpush2.bf16.msra.mxu0 0
    %648 = vmatprep.subr.bf16.mxu0 0
    %649 = vmatpush2.bf16.msra.mxu0 0
    %650 = vmatprep.subr.bf16.mxu0 0
    %651 = vmatpush2.bf16.msra.mxu0 0
    %652 = vmatprep.subr.bf16.mxu0 0
    %653 = vmatpush2.bf16.msra.mxu0 0
    %654 = vmatprep.mubr.bf16.mxu0 0
    %655 = vmatmul.mubr.bf16.gmra.mxu0 %v550
    %v656 = vpop.f32.mrf.mxu0
    %v657 = vadd.f32 %v572, %v656
    %v658 = vpop.f32.mrf.mxu0
    %v659 = vpop.f32.mrf.mxu0
    %v660 = vpop.f32.mrf.mxu0
    %661 = vdwg.mxu0
    %662 = vst [vmem:[%s6] sm:$0xff] %v657
    // Predicated region
    $region34: #{forward.1} parent=1 // pred_check
      _
    $region35: #{forward.1} parent=1 // pred_check_branch
      %664 = sbr.rel (0) target = $region37
    $region36: #{forward.1} parent=1 // pred_region
      _
    $region37: #{forward.1} parent=1 // pred_fallthru
      _
    // Predicated region
    $region38: #{forward.1} parent=1 // pred_check
      _
    $region39: #{forward.1} parent=1 // pred_check_branch
      %666 = sbr.rel (0) target = $region41
    $region40: #{forward.1} parent=1 // pred_region
      _
    $region41: #{forward.1} parent=1 // pred_fallthru
      _
    %667 = vsyncpa [#allocation3], 1
    %668 = vsyncpa [#allocation5], 1

</llo_original>
